<compile_context>
chip_gen: v5e
topology: v5e:2x2
jax: 0.10.0
libtpu: 0.0.40
codegen_flags: <defaults>
</compile_context>

<pallas_src>
import functools

import jax
import jax.numpy as jnp
from jax.experimental import pallas as pl
from jax.experimental.pallas import tpu as pltpu


def _round_up(x: int, m: int) -> int:
    return ((x + m - 1) // m) * m


def _cdiv(a: int, b: int) -> int:
    return (a + b - 1) // b


def _physical_vmem_bytes() -> int:
    """Per-core VMEM capacity; conservative fallback if query is unavailable."""
    try:
        return int(pltpu.get_tpu_info().vmem_capacity_bytes)
    except Exception:
        return 64 * 1024 * 1024  # v7x per-TC size: safe lower bound


def _resident_spec(shape):
    """Constant-index (weight) BlockSpec, single-buffered when supported."""
    if hasattr(pl, "Buffered"):
        return pl.BlockSpec(shape, lambda i: (0, 0), pipeline_mode=pl.Buffered(1))
    return pl.BlockSpec(shape, lambda i: (0, 0))


def _mlp_kernel(a_ref, b_ref, w1a_ref, w1b_ref, b1_ref, w2_ref, b2_ref,
                w3_ref, b3_ref, o_ref):
    # fc1 fused with the concat:  [a, b] @ W1 == a @ W1[:P] + b @ W1[P:]
    h = jnp.dot(a_ref[...], w1a_ref[...], preferred_element_type=jnp.float32)
    h = h + jnp.dot(b_ref[...], w1b_ref[...], preferred_element_type=jnp.float32)
    h = jnp.maximum(h + b1_ref[...], 0.0)        # ReLU; dropout = identity (inference)
    # fc2 + ReLU (bias/ReLU kept in f32 -- do not cast the epilogue to bf16)
    h = jnp.dot(h.astype(w2_ref.dtype), w2_ref[...],
                preferred_element_type=jnp.float32) + b2_ref[...]
    h = jnp.maximum(h, 0.0)
    # output layer (out dim lane-padded to a multiple of 128 in the wrapper)
    y = jnp.dot(h.astype(w3_ref.dtype), w3_ref[...],
                preferred_element_type=jnp.float32) + b3_ref[...]
    o_ref[...] = y.astype(o_ref.dtype)


@functools.partial(jax.jit, static_argnames=("block_b", "compute_dtype"))
def mlp_forward(protein_a, protein_b, w1, b1, w2, b2, w3, b3, *,
                block_b=512, compute_dtype=jnp.bfloat16):
    B, pdim = protein_a.shape
    in_dim, hid_dim = w1.shape
    out_dim = w3.shape[1]
    assert in_dim == 2 * pdim
    out_dtype = protein_a.dtype

    # Fuse the concat by splitting W1's rows.
    w1a, w1b = w1[:pdim], w1[pdim:]

    # Low-precision MXU operands (accumulation stays f32 in-kernel).
    if compute_dtype is not None:
        protein_a = protein_a.astype(compute_dtype)
        protein_b = protein_b.astype(compute_dtype)
        w1a = w1a.astype(compute_dtype)
        w1b = w1b.astype(compute_dtype)
        w2 = w2.astype(compute_dtype)
        w3 = w3.astype(compute_dtype)
    b1 = b1.astype(jnp.float32)
    b2 = b2.astype(jnp.float32)
    b3 = b3.astype(jnp.float32)

    # Lane-dense hidden dim: zero-pad hid to a multiple of 128 (padded columns
    # stay exactly zero through bias+ReLU, so results are unchanged).
    hid_pad = _round_up(hid_dim, 128)
    if hid_pad != hid_dim:
        dh = hid_pad - hid_dim
        w1a = jnp.pad(w1a, ((0, 0), (0, dh)))
        w1b = jnp.pad(w1b, ((0, 0), (0, dh)))
        b1 = jnp.pad(b1, ((0, 0), (0, dh)))
        w2 = jnp.pad(w2, ((0, dh), (0, dh)))
        b2 = jnp.pad(b2, ((0, 0), (0, dh)))
        w3 = jnp.pad(w3, ((0, dh), (0, 0)))

    # Lane-dense output: pad out_targets up to a multiple of 128 lanes.
    out_pad = _round_up(out_dim, 128)
    if out_pad != out_dim:
        w3 = jnp.pad(w3, ((0, 0), (0, out_pad - out_dim)))
        b3 = jnp.pad(b3, ((0, 0), (0, out_pad - out_dim)))

    # Batch tiling: pick bb to minimize padding, align to the packed-sublane
    # granule (bf16 packs 16 rows per vreg), and give the grid >= 2 steps for
    # large batches so v7x's two TensorCores both get work.
    sub = 16 if (compute_dtype is not None and
                 jnp.dtype(compute_dtype).itemsize == 2) else 8
    n_tiles = max(1, _cdiv(B, block_b))
    if B >= 128:
        n_tiles = max(n_tiles, 2)
    bb = _round_up(_cdiv(B, n_tiles), sub)
    Bp = _round_up(B, bb)
    if Bp != B:
        protein_a = jnp.pad(protein_a, ((0, Bp - B), (0, 0)))
        protein_b = jnp.pad(protein_b, ((0, Bp - B), (0, 0)))
    grid = (Bp // bb,)

    act_isize = jnp.dtype(protein_a.dtype).itemsize
    w_isize = jnp.dtype(w2.dtype).itemsize
    out_isize = jnp.dtype(out_dtype).itemsize

    # VMEM budget: single-buffered weights + double-buffered activation/output
    # tiles + f32 intermediates, clamped per generation.
    weight_bytes = (w1a.size + w1b.size + w2.size + w3.size) * w_isize
    bias_bytes = (b1.size + b2.size + b3.size) * 4
    act_tile_bytes = 2 * (2 * bb * pdim * act_isize)        # A and B, double-buffered
    out_tile_bytes = 2 * bb * out_pad * out_isize            # double-buffered
    scratch_bytes = 3 * bb * hid_pad * 4                     # f32 intermediates
    footprint = weight_bytes + bias_bytes + act_tile_bytes + out_tile_bytes + scratch_bytes
    phys_vmem = _physical_vmem_bytes()
    vmem_limit = int(min(max(2 * footprint, 32 * 1024 * 1024),
                         int(phys_vmem * 0.75)))

    cost = pl.CostEstimate(
        flops=2 * Bp * (2 * pdim * hid_pad + hid_pad * hid_pad + hid_pad * out_pad),
        transcendentals=0,
        bytes_accessed=(2 * Bp * pdim * act_isize
                        + weight_bytes + bias_bytes
                        + Bp * out_pad * out_isize),
    )

    out = pl.pallas_call(
        _mlp_kernel,
        out_shape=jax.ShapeDtypeStruct((Bp, out_pad), out_dtype),
        grid_spec=pltpu.PrefetchScalarGridSpec(
            num_scalar_prefetch=0,
            grid=grid,
            in_specs=[
                pl.BlockSpec((bb, pdim), lambda i: (i, 0)),     # proteinA tile
                pl.BlockSpec((bb, pdim), lambda i: (i, 0)),     # proteinB tile
                _resident_spec((pdim, hid_pad)),                # W1a (resident)
                _resident_spec((pdim, hid_pad)),                # W1b (resident)
                _resident_spec((1, hid_pad)),                   # b1
                _resident_spec((hid_pad, hid_pad)),             # W2
                _resident_spec((1, hid_pad)),                   # b2
                _resident_spec((hid_pad, out_pad)),             # W3 (lane-padded)
                _resident_spec((1, out_pad)),                   # b3 (lane-padded)
            ],
            out_specs=pl.BlockSpec((bb, out_pad), lambda i: (i, 0)),
        ),
        compiler_params=pltpu.CompilerParams(
            dimension_semantics=("parallel",),
            vmem_limit_bytes=vmem_limit,
        ),
        cost_estimate=cost,
    )(protein_a, protein_b, w1a, w1b, b1, w2, b2, w3, b3)

    # Slice off batch padding and lane padding.
    return out[:B, :out_dim]


def xavier_uniform(key, in_dim, out_dim, dtype=jnp.float32):
    # Matches torch.nn.init.xavier_uniform_ on a Linear weight of shape
    # (out_dim, in_dim); we store it transposed as (in_dim, out_dim).
    limit = (6.0 / (in_dim + out_dim)) ** 0.5
    return jax.random.uniform(key, (in_dim, out_dim), dtype, -limit, limit)


def linear_bias(key, in_dim, out_dim, dtype=jnp.float32):
    # PyTorch default Linear bias init: U(-1/sqrt(in_dim), 1/sqrt(in_dim)).
    bound = 1.0 / (in_dim ** 0.5)
    return jax.random.uniform(key, (1, out_dim), dtype, -bound, bound)


def reference_forward(pa, pb, w1, b1, w2, b2, w3, b3, compute_dtype=None):
    if compute_dtype is not None:
        pa = pa.astype(compute_dtype)
        pb = pb.astype(compute_dtype)
        w1 = w1.astype(compute_dtype)
        w2 = w2.astype(compute_dtype)
        w3 = w3.astype(compute_dtype)
    x = jnp.concatenate([pa, pb], axis=-1)
    h = jnp.maximum(
        jnp.dot(x, w1, preferred_element_type=jnp.float32) + b1.astype(jnp.float32), 0.0)
    h = jnp.maximum(
        jnp.dot(h.astype(w2.dtype), w2, preferred_element_type=jnp.float32)
        + b2.astype(jnp.float32), 0.0)
    return (jnp.dot(h.astype(w3.dtype), w3, preferred_element_type=jnp.float32)
            + b3.astype(jnp.float32))


if __name__ == "__main__":
    # Small shapes consistent with the module:
    #   protein_dim=16 -> fc1 input = 2*16 = 32, hid_dim=32, out_targets=4, batch=16
    protein_dim = 16
    hid_dim = 32
    out_targets = 4
    batch = 16

    key = jax.random.PRNGKey(0)
    k_a, k_b, k_w1, k_b1, k_w2, k_b2, k_w3, k_b3 = jax.random.split(key, 8)

    protein_a = jax.random.normal(k_a, (batch, protein_dim), jnp.float32)
    protein_b = jax.random.normal(k_b, (batch, protein_dim), jnp.float32)

    w1 = xavier_uniform(k_w1, 2 * protein_dim, hid_dim)
    b1 = linear_bias(k_b1, 2 * protein_dim, hid_dim)
    w2 = xavier_uniform(k_w2, hid_dim, hid_dim)
    b2 = linear_bias(k_b2, hid_dim, hid_dim)
    w3 = xavier_uniform(k_w3, hid_dim, out_targets)
    b3 = linear_bias(k_b3, hid_dim, out_targets)

    # Default (production) path: bf16 MXU operands, f32 accumulation.
    out_bf16 = mlp_forward(protein_a, protein_b, w1, b1, w2, b2, w3, b3)
    out_bf16 = jax.block_until_ready(out_bf16)
    ref_bf16 = reference_forward(protein_a, protein_b, w1, b1, w2, b2, w3, b3,
                                 compute_dtype=jnp.bfloat16)
    assert out_bf16.shape == (batch, out_targets)
    assert jnp.allclose(out_bf16, ref_bf16, atol=1e-2, rtol=1e-2), "bf16 mismatch vs reference"

    # Full-precision path: tight correctness check against the f32 reference.
    out_f32 = mlp_forward(protein_a, protein_b, w1, b1, w2, b2, w3, b3,
                          compute_dtype=None)
    out_f32 = jax.block_until_ready(out_f32)
    ref_f32 = reference_forward(protein_a, protein_b, w1, b1, w2, b2, w3, b3)
    assert out_f32.shape == (batch, out_targets)
    assert jnp.allclose(out_f32, ref_f32, atol=1e-5, rtol=1e-5), "f32 mismatch vs reference"

    print("KERNEL_OK")
</pallas_src>

<mosaic_0001>
module attributes {stable_mosaic.version = 11 : i64} {
  func.func @_mlp_kernel(%arg0: i32, %arg1: memref<16x16xbf16, #tpu.memory_space<vmem>>, %arg2: memref<16x16xbf16, #tpu.memory_space<vmem>>, %arg3: memref<16x128xbf16, #tpu.memory_space<vmem>>, %arg4: memref<16x128xbf16, #tpu.memory_space<vmem>>, %arg5: memref<1x128xf32, #tpu.memory_space<vmem>>, %arg6: memref<128x128xbf16, #tpu.memory_space<vmem>>, %arg7: memref<1x128xf32, #tpu.memory_space<vmem>>, %arg8: memref<128x128xbf16, #tpu.memory_space<vmem>>, %arg9: memref<1x128xf32, #tpu.memory_space<vmem>>, %arg10: memref<16x128xf32, #tpu.memory_space<vmem>>) attributes {dimension_semantics = [#tpu.dimension_semantics<parallel>], iteration_bounds = array<i64: 1>, scalar_prefetch = 0 : i64, scratch_operands = 0 : i64, tpu.core_type = #tpu.core_type<tc>, window_params = [{transform_indices = @transform_0, window_bounds = array<i64: 16, 16>}, {transform_indices = @transform_1, window_bounds = array<i64: 16, 16>}, {pipeline_mode = #tpu.pipeline_mode<synchronous>, transform_indices = @transform_2, window_bounds = array<i64: 16, 128>}, {pipeline_mode = #tpu.pipeline_mode<synchronous>, transform_indices = @transform_3, window_bounds = array<i64: 16, 128>}, {pipeline_mode = #tpu.pipeline_mode<synchronous>, transform_indices = @transform_4, window_bounds = array<i64: 1, 128>}, {pipeline_mode = #tpu.pipeline_mode<synchronous>, transform_indices = @transform_5, window_bounds = array<i64: 128, 128>}, {pipeline_mode = #tpu.pipeline_mode<synchronous>, transform_indices = @transform_6, window_bounds = array<i64: 1, 128>}, {pipeline_mode = #tpu.pipeline_mode<synchronous>, transform_indices = @transform_7, window_bounds = array<i64: 128, 128>}, {pipeline_mode = #tpu.pipeline_mode<synchronous>, transform_indices = @transform_8, window_bounds = array<i64: 1, 128>}, {transform_indices = @transform_9, window_bounds = array<i64: 16, 128>}]} {
    %c0 = arith.constant 0 : index
    %c0_0 = arith.constant 0 : index
    %0 = vector.load %arg1[%c0, %c0_0] : memref<16x16xbf16, #tpu.memory_space<vmem>>, vector<16x16xbf16>
    %c0_1 = arith.constant 0 : index
    %c0_2 = arith.constant 0 : index
    %1 = vector.load %arg3[%c0_1, %c0_2] : memref<16x128xbf16, #tpu.memory_space<vmem>>, vector<16x128xbf16>
    %cst = arith.constant dense<0.000000e+00> : vector<16x128xf32>
    %2 = tpu.matmul %0, %1, %cst {dimension_numbers = #tpu.dot_dimension_numbers<[1], [0], [0], [1], [0, 0, 1, 1], [], []>} : vector<16x16xbf16>, vector<16x128xbf16>, vector<16x128xf32> -> vector<16x128xf32>
    %c0_3 = arith.constant 0 : index
    %c0_4 = arith.constant 0 : index
    %3 = vector.load %arg2[%c0_3, %c0_4] : memref<16x16xbf16, #tpu.memory_space<vmem>>, vector<16x16xbf16>
    %c0_5 = arith.constant 0 : index
    %c0_6 = arith.constant 0 : index
    %4 = vector.load %arg4[%c0_5, %c0_6] : memref<16x128xbf16, #tpu.memory_space<vmem>>, vector<16x128xbf16>
    %cst_7 = arith.constant dense<0.000000e+00> : vector<16x128xf32>
    %5 = tpu.matmul %3, %4, %cst_7 {dimension_numbers = #tpu.dot_dimension_numbers<[1], [0], [0], [1], [0, 0, 1, 1], [], []>} : vector<16x16xbf16>, vector<16x128xbf16>, vector<16x128xf32> -> vector<16x128xf32>
    %6 = arith.addf %2, %5 : vector<16x128xf32>
    %c0_8 = arith.constant 0 : index
    %c0_9 = arith.constant 0 : index
    %7 = vector.load %arg5[%c0_8, %c0_9] : memref<1x128xf32, #tpu.memory_space<vmem>>, vector<1x128xf32>
    %8 = vector.broadcast %7 : vector<1x128xf32> to vector<16x128xf32>
    %9 = arith.addf %6, %8 : vector<16x128xf32>
    %cst_10 = arith.constant 0.000000e+00 : f32
    %10 = vector.broadcast %cst_10 : f32 to vector<16x128xf32>
    %11 = arith.maximumf %9, %10 : vector<16x128xf32>
    %12 = arith.truncf %11 : vector<16x128xf32> to vector<16x128xbf16>
    %c0_11 = arith.constant 0 : index
    %c0_12 = arith.constant 0 : index
    %13 = vector.load %arg6[%c0_11, %c0_12] : memref<128x128xbf16, #tpu.memory_space<vmem>>, vector<128x128xbf16>
    %cst_13 = arith.constant dense<0.000000e+00> : vector<16x128xf32>
    %14 = tpu.matmul %12, %13, %cst_13 {dimension_numbers = #tpu.dot_dimension_numbers<[1], [0], [0], [1], [0, 0, 1, 1], [], []>} : vector<16x128xbf16>, vector<128x128xbf16>, vector<16x128xf32> -> vector<16x128xf32>
    %c0_14 = arith.constant 0 : index
    %c0_15 = arith.constant 0 : index
    %15 = vector.load %arg7[%c0_14, %c0_15] : memref<1x128xf32, #tpu.memory_space<vmem>>, vector<1x128xf32>
    %16 = vector.broadcast %15 : vector<1x128xf32> to vector<16x128xf32>
    %17 = arith.addf %14, %16 : vector<16x128xf32>
    %cst_16 = arith.constant 0.000000e+00 : f32
    %18 = vector.broadcast %cst_16 : f32 to vector<16x128xf32>
    %19 = arith.maximumf %17, %18 : vector<16x128xf32>
    %20 = arith.truncf %19 : vector<16x128xf32> to vector<16x128xbf16>
    %c0_17 = arith.constant 0 : index
    %c0_18 = arith.constant 0 : index
    %21 = vector.load %arg8[%c0_17, %c0_18] : memref<128x128xbf16, #tpu.memory_space<vmem>>, vector<128x128xbf16>
    %cst_19 = arith.constant dense<0.000000e+00> : vector<16x128xf32>
    %22 = tpu.matmul %20, %21, %cst_19 {dimension_numbers = #tpu.dot_dimension_numbers<[1], [0], [0], [1], [0, 0, 1, 1], [], []>} : vector<16x128xbf16>, vector<128x128xbf16>, vector<16x128xf32> -> vector<16x128xf32>
    %c0_20 = arith.constant 0 : index
    %c0_21 = arith.constant 0 : index
    %23 = vector.load %arg9[%c0_20, %c0_21] : memref<1x128xf32, #tpu.memory_space<vmem>>, vector<1x128xf32>
    %24 = vector.broadcast %23 : vector<1x128xf32> to vector<16x128xf32>
    %25 = arith.addf %22, %24 : vector<16x128xf32>
    %c0_22 = arith.constant 0 : index
    %c0_23 = arith.constant 0 : index
    %26 = vector.load %arg10[%c0_22, %c0_23] : memref<16x128xf32, #tpu.memory_space<vmem>>, vector<16x128xf32>
    tpu.vector_store %arg10[%c0_22, %c0_23], %25 {strides = array<i32>} : memref<16x128xf32, #tpu.memory_space<vmem>>, vector<16x128xf32>,
    return
  }
  func.func @transform_0(%arg0: i32) -> (i32, i32) {
    %c0_i32 = arith.constant 0 : i32
    %c0_i32_0 = arith.constant 0 : i32
    return %arg0, %c0_i32 : i32, i32
  }
  func.func @transform_1(%arg0: i32) -> (i32, i32) {
    %c0_i32 = arith.constant 0 : i32
    %c0_i32_0 = arith.constant 0 : i32
    return %arg0, %c0_i32 : i32, i32
  }
  func.func @transform_2(%arg0: i32) -> (i32, i32) {
    %c0_i32 = arith.constant 0 : i32
    %c0_i32_0 = arith.constant 0 : i32
    %c0_i32_1 = arith.constant 0 : i32
    return %c0_i32, %c0_i32_0 : i32, i32
  }
  func.func @transform_3(%arg0: i32) -> (i32, i32) {
    %c0_i32 = arith.constant 0 : i32
    %c0_i32_0 = arith.constant 0 : i32
    %c0_i32_1 = arith.constant 0 : i32
    return %c0_i32, %c0_i32_0 : i32, i32
  }
  func.func @transform_4(%arg0: i32) -> (i32, i32) {
    %c0_i32 = arith.constant 0 : i32
    %c0_i32_0 = arith.constant 0 : i32
    %c0_i32_1 = arith.constant 0 : i32
    return %c0_i32, %c0_i32_0 : i32, i32
  }
  func.func @transform_5(%arg0: i32) -> (i32, i32) {
    %c0_i32 = arith.constant 0 : i32
    %c0_i32_0 = arith.constant 0 : i32
    %c0_i32_1 = arith.constant 0 : i32
    return %c0_i32, %c0_i32_0 : i32, i32
  }
  func.func @transform_6(%arg0: i32) -> (i32, i32) {
    %c0_i32 = arith.constant 0 : i32
    %c0_i32_0 = arith.constant 0 : i32
    %c0_i32_1 = arith.constant 0 : i32
    return %c0_i32, %c0_i32_0 : i32, i32
  }
  func.func @transform_7(%arg0: i32) -> (i32, i32) {
    %c0_i32 = arith.constant 0 : i32
    %c0_i32_0 = arith.constant 0 : i32
    %c0_i32_1 = arith.constant 0 : i32
    return %c0_i32, %c0_i32_0 : i32, i32
  }
  func.func @transform_8(%arg0: i32) -> (i32, i32) {
    %c0_i32 = arith.constant 0 : i32
    %c0_i32_0 = arith.constant 0 : i32
    %c0_i32_1 = arith.constant 0 : i32
    return %c0_i32, %c0_i32_0 : i32, i32
  }
  func.func @transform_9(%arg0: i32) -> (i32, i32) {
    %c0_i32 = arith.constant 0 : i32
    %c0_i32_0 = arith.constant 0 : i32
    return %arg0, %c0_i32 : i32, i32
  }
}

</mosaic_0001>

<llo_original>
// kernel: mlp_forward.1
$region0: #{mlp_forward.1}
  #allocation0 [shape = 'u32[]', space=smem, size = 0x4, offset = 0x4, fixed_abs, tag = 'smem constant byte address 0x4 - core index']
  #allocation1 [shape = 'u32[72,128]{1,0:T(1,128)}', space=vmem, size = 0x9000, scoped, tag = 'internal scratch']
  %s0 = inlined_call_operand.vmem [shape: bf16[16,16], index: 0, kind: input, shape index: {}]
  %s1 = inlined_call_operand.vmem [shape: bf16[16,16], index: 1, kind: input, shape index: {}]
  %s2 = inlined_call_operand.vmem [shape: bf16[16,128], index: 2, kind: input, shape index: {}]
  %s3 = inlined_call_operand.vmem [shape: bf16[16,128], index: 3, kind: input, shape index: {}]
  %s4 = inlined_call_operand.vmem [shape: f32[1,128], index: 4, kind: input, shape index: {}]
  %s5 = inlined_call_operand.vmem [shape: bf16[128,128], index: 5, kind: input, shape index: {}]
  %s6 = inlined_call_operand.vmem [shape: f32[1,128], index: 6, kind: input, shape index: {}]
  %s7 = inlined_call_operand.vmem [shape: bf16[128,128], index: 7, kind: input, shape index: {}]
  %s8 = inlined_call_operand.vmem [shape: f32[1,128], index: 8, kind: input, shape index: {}]
  %s9 = inlined_call_operand.vmem [shape: f32[16,128], index: 9, kind: output, shape index: {}]
  %s10 = sld [smem:[#allocation0]]
  $region46: #{mlp_forward.1} parent=0
    _
  %s12 = ssub.s32 1, %s10
  %s13 = scalar_select 0, %s12, %s10
  // Predicated region
  $region2: #{mlp_forward.1} parent=0 // pred_check
    _
  $region3: #{mlp_forward.1} parent=0 // pred_check_branch
    %15 = sbr.rel (0) target = $region5
  $region4: #{mlp_forward.1} parent=0 // pred_region
    _
  $region5: #{mlp_forward.1} parent=0 // pred_fallthru
    _
  // Predicated region
  $region6: #{mlp_forward.1} parent=0 // pred_check
    _
  $region7: #{mlp_forward.1} parent=0 // pred_check_branch
    %17 = sbr.rel (0) target = $region9
  $region8: #{mlp_forward.1} parent=0 // pred_region
    _
  $region9: #{mlp_forward.1} parent=0 // pred_fallthru
    _
  // Predicated region
  $region10: #{mlp_forward.1} parent=0 // pred_check
    _
  $region11: #{mlp_forward.1} parent=0 // pred_check_branch
    %19 = sbr.rel (0) target = $region13
  $region12: #{mlp_forward.1} parent=0 // pred_region
    _
  $region13: #{mlp_forward.1} parent=0 // pred_fallthru
    _
  // Predicated region
  $region14: #{mlp_forward.1} parent=0 // pred_check
    _
  $region15: #{mlp_forward.1} parent=0 // pred_check_branch
    %21 = sbr.rel (0) target = $region17
  $region16: #{mlp_forward.1} parent=0 // pred_region
    _
  $region17: #{mlp_forward.1} parent=0 // pred_fallthru
    _
  // Predicated region
  $region18: #{mlp_forward.1} parent=0 // pred_check
    _
  $region19: #{mlp_forward.1} parent=0 // pred_check_branch
    %23 = sbr.rel (0) target = $region21
  $region20: #{mlp_forward.1} parent=0 // pred_region
    _
  $region21: #{mlp_forward.1} parent=0 // pred_fallthru
    _
  // Predicated region
  $region22: #{mlp_forward.1} parent=0 // pred_check
    _
  $region23: #{mlp_forward.1} parent=0 // pred_check_branch
    %25 = sbr.rel (0) target = $region25
  $region24: #{mlp_forward.1} parent=0 // pred_region
    _
  $region25: #{mlp_forward.1} parent=0 // pred_fallthru
    _
  // Predicated region
  $region26: #{mlp_forward.1} parent=0 // pred_check
    _
  $region27: #{mlp_forward.1} parent=0 // pred_check_branch
    %27 = sbr.rel (0) target = $region29
  $region28: #{mlp_forward.1} parent=0 // pred_region
    _
  $region29: #{mlp_forward.1} parent=0 // pred_fallthru
    _
  // Predicated region
  $region30: #{mlp_forward.1} parent=0 // pred_check
    _
  $region31: #{mlp_forward.1} parent=0 // pred_check_branch
    %29 = sbr.rel (0) target = $region33
  $region32: #{mlp_forward.1} parent=0 // pred_region
    _
  $region33: #{mlp_forward.1} parent=0 // pred_fallthru
    _
  // Predicated region
  $region34: #{mlp_forward.1} parent=0 // pred_check
    _
  $region35: #{mlp_forward.1} parent=0 // pred_check_branch
    %31 = sbr.rel (0) target = $region37
  $region36: #{mlp_forward.1} parent=0 // pred_region
    _
  $region37: #{mlp_forward.1} parent=0 // pred_fallthru
    _
  %v33 = vld [vmem:[%s0] sm:$0xf]
  %v34 = vld [vmem:[%s0 + $0x4] sm:$0xf]
  %v35 = vld [vmem:[%s2] sm:$0xf]
  %v36 = vld [vmem:[%s2 + $0x4] sm:$0xf]
  %v37 = vld [vmem:[%s1] sm:$0xf]
  %v38 = vld [vmem:[%s1 + $0x4] sm:$0xf]
  %v39 = vld [vmem:[%s3] sm:$0xf]
  %v40 = vld [vmem:[%s3 + $0x4] sm:$0xf]
  %v43 = vunpack.c.l.b16 %v37
  %v44 = vunpack.c.l.b16 %v38
  %v45 = vpack.c.b16 %v44, %v43
  %v48 = vunpack.c.l.b16 %v39
  %v49 = vunpack.c.l.b16 %v40
  %v50 = vpack.c.b16 %v49, %v48
  %vm52 = vcmask 130048
  %v54 = vsel %vm52, %v45, 0
  %56 = vmatpush.bf16.msra.mxu0 0
  %57 = vmatpush.bf16.msra.mxu0 0
  %58 = vmatpush.bf16.msra.mxu0 0
  %59 = vmatpush.bf16.msra.mxu0 0
  %60 = vmatpush.bf16.msra.mxu0 0
  %61 = vmatpush.bf16.msra.mxu0 0
  %62 = vmatpush.bf16.msra.mxu0 0
  %63 = vmatpush.bf16.msra.mxu0 %v50
  %64 = vmatmul.bf16.gmra.mxu0 %v54
  %v65 = vpop.f32.mrf.mxu0
  %v66 = vadd.f32 0.0, %v65
  %v67 = vpop.f32.mrf.mxu0
  %v68 = vadd.f32 0.0, %v67
  %69 = vdwg.mxu0
  %v72 = vunpack.c.l.b16 %v33
  %v73 = vunpack.c.l.b16 %v34
  %v74 = vpack.c.b16 %v73, %v72
  %v77 = vunpack.c.l.b16 %v35
  %v78 = vunpack.c.l.b16 %v36
  %v79 = vpack.c.b16 %v78, %v77
  %v82 = vsel %vm52, %v74, 0
  %84 = vmatpush.bf16.msra.mxu0 0
  %85 = vmatpush.bf16.msra.mxu0 0
  %86 = vmatpush.bf16.msra.mxu0 0
  %87 = vmatpush.bf16.msra.mxu0 0
  %88 = vmatpush.bf16.msra.mxu0 0
  %89 = vmatpush.bf16.msra.mxu0 0
  %90 = vmatpush.bf16.msra.mxu0 0
  %91 = vmatpush.bf16.msra.mxu0 %v79
  %92 = vmatmul.bf16.gmra.mxu0 %v82
  %v93 = vpop.f32.mrf.mxu0
  %v94 = vadd.f32 %v66, %v93
  %v95 = vpop.f32.mrf.mxu0
  %v96 = vadd.f32 %v68, %v95
  %97 = vdwg.mxu0
  %v98 = vld [vmem:[%s4] sm:$0x1]
  %v100 = vperm.slane %v98, 0
  %v102 = vadd.f32 %v94, %v100
  %v103 = vadd.f32 %v96, %v100
  %v104 = vmax.f32 %v102, 0.0
  %v105 = vmax.f32 %v103, 0.0
  %v106 = vpack.c.bf16 %v105, %v104
  %v107 = vld [vmem:[%s5] sm:$0xf]
  %v108 = vld [vmem:[%s5 + $0x4] sm:$0xf]
  %v109 = vld [vmem:[%s5 + $0x8] sm:$0xf]
  %v110 = vld [vmem:[%s5 + $0xc] sm:$0xf]
  %v111 = vld [vmem:[%s5 + $0x10] sm:$0xf]
  %v112 = vld [vmem:[%s5 + $0x14] sm:$0xf]
  %v113 = vld [vmem:[%s5 + $0x18] sm:$0xf]
  %v114 = vld [vmem:[%s5 + $0x1c] sm:$0xf]
  %v115 = vld [vmem:[%s5 + $0x20] sm:$0xf]
  %v116 = vld [vmem:[%s5 + $0x24] sm:$0xf]
  %v117 = vld [vmem:[%s5 + $0x28] sm:$0xf]
  %v118 = vld [vmem:[%s5 + $0x2c] sm:$0xf]
  %v119 = vld [vmem:[%s5 + $0x30] sm:$0xf]
  %v120 = vld [vmem:[%s5 + $0x34] sm:$0xf]
  %v121 = vld [vmem:[%s5 + $0x38] sm:$0xf]
  %v122 = vld [vmem:[%s5 + $0x3c] sm:$0xf]
  %v123 = vld [vmem:[%s6] sm:$0x1]
  %v125 = vperm.slane %v123, 0
  %v143 = vunpack.c.l.b16 %v107
  %v144 = vunpack.c.l.b16 %v108
  %v145 = vunpack.c.l.b16 %v109
  %v146 = vunpack.c.l.b16 %v110
  %v147 = vunpack.c.l.b16 %v111
  %v148 = vunpack.c.l.b16 %v112
  %v149 = vunpack.c.l.b16 %v113
  %v150 = vunpack.c.l.b16 %v114
  %v151 = vunpack.c.l.b16 %v115
  %v152 = vunpack.c.l.b16 %v116
  %v153 = vunpack.c.l.b16 %v117
  %v154 = vunpack.c.l.b16 %v118
  %v155 = vunpack.c.l.b16 %v119
  %v156 = vunpack.c.l.b16 %v120
  %v157 = vunpack.c.l.b16 %v121
  %v158 = vunpack.c.l.b16 %v122
  %v159 = vpack.c.b16 %v144, %v143
  %v160 = vpack.c.b16 %v146, %v145
  %v161 = vpack.c.b16 %v148, %v147
  %v162 = vpack.c.b16 %v150, %v149
  %v163 = vpack.c.b16 %v152, %v151
  %v164 = vpack.c.b16 %v154, %v153
  %v165 = vpack.c.b16 %v156, %v155
  %v166 = vpack.c.b16 %v158, %v157
  %175 = vmatpush.bf16.msra.mxu0 %v166
  %176 = vmatpush.bf16.msra.mxu0 %v165
  %177 = vmatpush.bf16.msra.mxu0 %v164
  %178 = vmatpush.bf16.msra.mxu0 %v163
  %179 = vmatpush.bf16.msra.mxu0 %v162
  %180 = vmatpush.bf16.msra.mxu0 %v161
  %181 = vmatpush.bf16.msra.mxu0 %v160
  %182 = vmatpush.bf16.msra.mxu0 %v159
  %183 = vmatmul.bf16.gmra.mxu0 %v106
  %v184 = vpop.f32.mrf.mxu0
  %v185 = vadd.f32 %v125, %v184
  %v186 = vpop.f32.mrf.mxu0
  %v187 = vadd.f32 %v125, %v186
  %188 = vdwg.mxu0
  %v189 = vmax.f32 %v185, 0.0
  %v190 = vmax.f32 %v187, 0.0
  %v191 = vpack.c.bf16 %v190, %v189
  %v192 = vld [vmem:[%s7] sm:$0xf]
  %v193 = vld [vmem:[%s7 + $0x4] sm:$0xf]
  %v194 = vld [vmem:[%s7 + $0x8] sm:$0xf]
  %v195 = vld [vmem:[%s7 + $0xc] sm:$0xf]
  %v196 = vld [vmem:[%s7 + $0x10] sm:$0xf]
  %v197 = vld [vmem:[%s7 + $0x14] sm:$0xf]
  %v198 = vld [vmem:[%s7 + $0x18] sm:$0xf]
  %v199 = vld [vmem:[%s7 + $0x1c] sm:$0xf]
  %v200 = vld [vmem:[%s7 + $0x20] sm:$0xf]
  %v201 = vld [vmem:[%s7 + $0x24] sm:$0xf]
  %v202 = vld [vmem:[%s7 + $0x28] sm:$0xf]
  %v203 = vld [vmem:[%s7 + $0x2c] sm:$0xf]
  %v204 = vld [vmem:[%s7 + $0x30] sm:$0xf]
  %v205 = vld [vmem:[%s7 + $0x34] sm:$0xf]
  %v206 = vld [vmem:[%s7 + $0x38] sm:$0xf]
  %v207 = vld [vmem:[%s7 + $0x3c] sm:$0xf]
  %v208 = vld [vmem:[%s8] sm:$0x1]
  %v210 = vperm.slane %v208, 0
  %v228 = vunpack.c.l.b16 %v192
  %v229 = vunpack.c.l.b16 %v193
  %v230 = vunpack.c.l.b16 %v194
  %v231 = vunpack.c.l.b16 %v195
  %v232 = vunpack.c.l.b16 %v196
  %v233 = vunpack.c.l.b16 %v197
  %v234 = vunpack.c.l.b16 %v198
  %v235 = vunpack.c.l.b16 %v199
  %v236 = vunpack.c.l.b16 %v200
  %v237 = vunpack.c.l.b16 %v201
  %v238 = vunpack.c.l.b16 %v202
  %v239 = vunpack.c.l.b16 %v203
  %v240 = vunpack.c.l.b16 %v204
  %v241 = vunpack.c.l.b16 %v205
  %v242 = vunpack.c.l.b16 %v206
  %v243 = vunpack.c.l.b16 %v207
  %v244 = vpack.c.b16 %v229, %v228
  %v245 = vpack.c.b16 %v231, %v230
  %v246 = vpack.c.b16 %v233, %v232
  %v247 = vpack.c.b16 %v235, %v234
  %v248 = vpack.c.b16 %v237, %v236
  %v249 = vpack.c.b16 %v239, %v238
  %v250 = vpack.c.b16 %v241, %v240
  %v251 = vpack.c.b16 %v243, %v242
  %260 = vmatpush.bf16.msra.mxu0 %v251
  %261 = vmatpush.bf16.msra.mxu0 %v250
  %262 = vmatpush.bf16.msra.mxu0 %v249
  %263 = vmatpush.bf16.msra.mxu0 %v248
  %264 = vmatpush.bf16.msra.mxu0 %v247
  %265 = vmatpush.bf16.msra.mxu0 %v246
  %266 = vmatpush.bf16.msra.mxu0 %v245
  %267 = vmatpush.bf16.msra.mxu0 %v244
  %268 = vmatmul.bf16.gmra.mxu0 %v191
  %v269 = vpop.f32.mrf.mxu0
  %v270 = vadd.f32 %v210, %v269
  %v271 = vpop.f32.mrf.mxu0
  %v272 = vadd.f32 %v210, %v271
  %273 = vdwg.mxu0
  %274 = vst [vmem:[%s9] sm:$0xff] %v270
  %275 = vst [vmem:[%s9 + $0x8] sm:$0xff] %v272
  // Predicated region
  $region38: #{mlp_forward.1} parent=0 // pred_check
    _
  $region39: #{mlp_forward.1} parent=0 // pred_check_branch
    %277 = sbr.rel (0) target = $region41
  $region40: #{mlp_forward.1} parent=0 // pred_region
    _
  $region41: #{mlp_forward.1} parent=0 // pred_fallthru
    _
  // Predicated region
  $region42: #{mlp_forward.1} parent=0 // pred_check
    _
  $region43: #{mlp_forward.1} parent=0 // pred_check_branch
    %279 = sbr.rel (0) target = $region45
  $region44: #{mlp_forward.1} parent=0 // pred_region
    _
  $region45: #{mlp_forward.1} parent=0 // pred_fallthru
    _

</llo_original>
